<compile_context>
chip_gen: v7x
topology: tpu7x:2x2x1
jax: 0.10.0
libtpu: 0.0.40
codegen_flags: <defaults>
</compile_context>

<pallas_src>
import jax
import jax.numpy as jnp
from jax.experimental import pallas as pl
from jax.experimental.pallas import tpu as pltpu


def se_block_kernel(x_ref, w1t_ref, b1_ref, w2t_ref, b2_ref, o_ref):
    # x block: (Nb, C, L) float32
    x = x_ref[...]

    # --- squeeze: global average pool over L (lane reduction) ---
    pooled = jnp.mean(x, axis=-1)                                   # (Nb, C)

    # --- excite: fused dense matmuls over the whole batch block ---
    h = jnp.dot(pooled, w1t_ref[...],
                preferred_element_type=jnp.float32) + b1_ref[...]   # (Nb, Cr)
    h = jnp.maximum(h, 0.0)
    s = jnp.dot(h, w2t_ref[...],
                preferred_element_type=jnp.float32) + b2_ref[...]   # (Nb, C)
    s = jax.nn.sigmoid(s)                                           # (Nb, C)

    # --- scale: single broadcast over L for the whole block, dense store ---
    o_ref[...] = x * s[:, :, None]                                  # (Nb, C, L)


def se_block(x, w1, b1, w2, b2, *, target_block_bytes=2 << 20):
    """Squeeze-and-excitation forward.

    x : (N, C, L) float32
    w1: (C//16, C)   b1: (C//16,)      (Conv1d(C, C//16, k=1) weights, k squeezed)
    w2: (C, C//16)   b2: (C,)          (Conv1d(C//16, C, k=1) weights, k squeezed)
    """
    N, C, L = x.shape
    Cr = w1.shape[0]

    # Batch-block size: aim for ~2 MiB of x per block (mem-bound sweet spot).
    # With double-buffered input + output that is <= ~8 MiB of VMEM, safely
    # under the 16 MiB v5e scoped-VMEM default (and far under v6e/v7x limits),
    # so no vmem_limit_bytes override is needed.  Nb is shrunk to a divisor of
    # N so every block is full (no partial-block edge cases).
    per_batch_bytes = C * L * x.dtype.itemsize
    nb = int(max(1, min(N, target_block_bytes // per_batch_bytes)))
    while N % nb != 0:
        nb -= 1
    grid = (N // nb,)

    # Layout plumbing done once in the wrapper: transpose weights so the
    # kernel runs (Nb, C) @ (C, Cr) and (Nb, Cr) @ (Cr, C); biases as rows.
    w1t = jnp.transpose(w1)          # (C, Cr)
    w2t = jnp.transpose(w2)          # (Cr, C)
    b1r = b1.reshape(1, Cr)
    b2r = b2.reshape(1, C)

    return pl.pallas_call(
        se_block_kernel,
        out_shape=jax.ShapeDtypeStruct((N, C, L), x.dtype),
        grid_spec=pltpu.PrefetchScalarGridSpec(
            num_scalar_prefetch=0,
            grid=grid,
            in_specs=[
                pl.BlockSpec((nb, C, L), lambda b: (b, 0, 0)),   # x batch block
                pl.BlockSpec((C, Cr),    lambda b: (0, 0)),      # W1^T (full)
                pl.BlockSpec((1, Cr),    lambda b: (0, 0)),      # b1
                pl.BlockSpec((Cr, C),    lambda b: (0, 0)),      # W2^T (full)
                pl.BlockSpec((1, C),     lambda b: (0, 0)),      # b2
            ],
            out_specs=pl.BlockSpec((nb, C, L), lambda b: (b, 0, 0)),
        ),
        compiler_params=pltpu.CompilerParams(
            # Batch-block axis is independent -> shards across both v7x
            # TensorCores; no-op on single-TC v5e/v6e.
            dimension_semantics=("parallel",)),
    )(x, w1t, b1r, w2t, b2r)


def se_block_ref(x, w1, b1, w2, b2):
    """Pure-JAX reference of the PyTorch forward."""
    pooled = jnp.mean(x, axis=-1)                            # (N, C)
    h = jnp.maximum(pooled @ w1.T + b1[None, :], 0.0)        # (N, C//16)
    s = jax.nn.sigmoid(h @ w2.T + b2[None, :])               # (N, C)
    return x * s[:, :, None]


if __name__ == "__main__":
    # Small shapes consistent with the module: C must be >= 16 (C // 16 hidden).
    N, C, L = 8, 64, 128
    Cr = C // 16

    key = jax.random.PRNGKey(0)
    kx, k1, k2, k3, k4 = jax.random.split(key, 5)

    x = jax.random.normal(kx, (N, C, L), dtype=jnp.float32)

    # Deterministic parameter init, shapes matching Conv1d(C, C//16, 1) and
    # Conv1d(C//16, C, 1) with the size-1 kernel dim squeezed away.
    w1 = 0.1 * jax.random.normal(k1, (Cr, C), dtype=jnp.float32)
    b1 = 0.1 * jax.random.normal(k2, (Cr,), dtype=jnp.float32)
    w2 = 0.1 * jax.random.normal(k3, (C, Cr), dtype=jnp.float32)
    b2 = 0.1 * jax.random.normal(k4, (C,), dtype=jnp.float32)

    out = se_block(x, w1, b1, w2, b2)
    out = jax.block_until_ready(out)

    ref = se_block_ref(x, w1, b1, w2, b2)
    assert out.shape == (N, C, L) and out.dtype == jnp.float32
    assert jnp.allclose(out, ref, atol=1e-5, rtol=1e-5), "mismatch vs reference"

    print("KERNEL_OK")
</pallas_src>

<mosaic_0001>
module attributes {stable_mosaic.version = 11 : i64} {
  func.func @se_block_kernel(%arg0: i32, %arg1: memref<8x64x128xf32, #tpu.memory_space<vmem>>, %arg2: memref<64x4xf32, #tpu.memory_space<vmem>>, %arg3: memref<1x4xf32, #tpu.memory_space<vmem>>, %arg4: memref<4x64xf32, #tpu.memory_space<vmem>>, %arg5: memref<1x64xf32, #tpu.memory_space<vmem>>, %arg6: memref<8x64x128xf32, #tpu.memory_space<vmem>>) attributes {dimension_semantics = [#tpu.dimension_semantics<parallel>], iteration_bounds = array<i64: 1>, scalar_prefetch = 0 : i64, scratch_operands = 0 : i64, tpu.core_type = #tpu.core_type<tc>, window_params = [{transform_indices = @transform_0, window_bounds = array<i64: 8, 64, 128>}, {pipeline_mode = #tpu.pipeline_mode<synchronous>, transform_indices = @transform_1, window_bounds = array<i64: 64, 4>}, {pipeline_mode = #tpu.pipeline_mode<synchronous>, transform_indices = @transform_2, window_bounds = array<i64: 1, 4>}, {pipeline_mode = #tpu.pipeline_mode<synchronous>, transform_indices = @transform_3, window_bounds = array<i64: 4, 64>}, {pipeline_mode = #tpu.pipeline_mode<synchronous>, transform_indices = @transform_4, window_bounds = array<i64: 1, 64>}, {transform_indices = @transform_5, window_bounds = array<i64: 8, 64, 128>}]} {
    %c0 = arith.constant 0 : index
    %c0_0 = arith.constant 0 : index
    %c0_1 = arith.constant 0 : index
    %0 = vector.load %arg1[%c0, %c0_0, %c0_1] : memref<8x64x128xf32, #tpu.memory_space<vmem>>, vector<8x64x128xf32>
    %cst = arith.constant dense<0.000000e+00> : vector<8x64xf32>
    %1 = vector.multi_reduction <add>, %0, %cst [2] : vector<8x64x128xf32> to vector<8x64xf32>
    %cst_2 = arith.constant 1.280000e+02 : f32
    %2 = vector.broadcast %cst_2 : f32 to vector<8x64xf32>
    %3 = arith.divf %1, %2 : vector<8x64xf32>
    %c0_3 = arith.constant 0 : index
    %c0_4 = arith.constant 0 : index
    %4 = vector.load %arg2[%c0_3, %c0_4] : memref<64x4xf32, #tpu.memory_space<vmem>>, vector<64x4xf32>
    %cst_5 = arith.constant dense<0.000000e+00> : vector<8x4xf32>
    %5 = tpu.matmul %3, %4, %cst_5 {dimension_numbers = #tpu.dot_dimension_numbers<[1], [0], [0], [1], [0, 0, 1, 1], [], []>} : vector<8x64xf32>, vector<64x4xf32>, vector<8x4xf32> -> vector<8x4xf32>
    %c0_6 = arith.constant 0 : index
    %c0_7 = arith.constant 0 : index
    %6 = vector.load %arg3[%c0_6, %c0_7] : memref<1x4xf32, #tpu.memory_space<vmem>>, vector<1x4xf32>
    %7 = vector.broadcast %6 : vector<1x4xf32> to vector<8x4xf32>
    %8 = arith.addf %5, %7 : vector<8x4xf32>
    %cst_8 = arith.constant 0.000000e+00 : f32
    %9 = vector.broadcast %cst_8 : f32 to vector<8x4xf32>
    %10 = arith.maximumf %8, %9 : vector<8x4xf32>
    %c0_9 = arith.constant 0 : index
    %c0_10 = arith.constant 0 : index
    %11 = vector.load %arg4[%c0_9, %c0_10] : memref<4x64xf32, #tpu.memory_space<vmem>>, vector<4x64xf32>
    %cst_11 = arith.constant dense<0.000000e+00> : vector<8x64xf32>
    %12 = tpu.matmul %10, %11, %cst_11 {dimension_numbers = #tpu.dot_dimension_numbers<[1], [0], [0], [1], [0, 0, 1, 1], [], []>} : vector<8x4xf32>, vector<4x64xf32>, vector<8x64xf32> -> vector<8x64xf32>
    %c0_12 = arith.constant 0 : index
    %c0_13 = arith.constant 0 : index
    %13 = vector.load %arg5[%c0_12, %c0_13] : memref<1x64xf32, #tpu.memory_space<vmem>>, vector<1x64xf32>
    %14 = vector.broadcast %13 : vector<1x64xf32> to vector<8x64xf32>
    %15 = arith.addf %12, %14 : vector<8x64xf32>
    %16 = arith.negf %15 : vector<8x64xf32>
    %17 = math.exp %16 : vector<8x64xf32>
    %cst_14 = arith.constant 1.000000e+00 : f32
    %18 = vector.broadcast %cst_14 : f32 to vector<8x64xf32>
    %19 = arith.addf %18, %17 : vector<8x64xf32>
    %20 = arith.divf %18, %19 : vector<8x64xf32>
    %21 = vector.shape_cast %20 : vector<8x64xf32> to vector<8x64x1xf32>
    %22 = vector.broadcast %21 : vector<8x64x1xf32> to vector<8x64x128xf32>
    %23 = arith.mulf %0, %22 : vector<8x64x128xf32>
    %c0_15 = arith.constant 0 : index
    %c0_16 = arith.constant 0 : index
    %c0_17 = arith.constant 0 : index
    %24 = vector.load %arg6[%c0_15, %c0_16, %c0_17] : memref<8x64x128xf32, #tpu.memory_space<vmem>>, vector<8x64x128xf32>
    tpu.vector_store %arg6[%c0_15, %c0_16, %c0_17], %23 {strides = array<i32>} : memref<8x64x128xf32, #tpu.memory_space<vmem>>, vector<8x64x128xf32>,
    return
  }
  func.func @transform_0(%arg0: i32) -> (i32, i32, i32) {
    %c0_i32 = arith.constant 0 : i32
    %c0_i32_0 = arith.constant 0 : i32
    %c0_i32_1 = arith.constant 0 : i32
    return %arg0, %c0_i32, %c0_i32_0 : i32, i32, i32
  }
  func.func @transform_1(%arg0: i32) -> (i32, i32) {
    %c0_i32 = arith.constant 0 : i32
    %c0_i32_0 = arith.constant 0 : i32
    %c0_i32_1 = arith.constant 0 : i32
    return %c0_i32, %c0_i32_0 : i32, i32
  }
  func.func @transform_2(%arg0: i32) -> (i32, i32) {
    %c0_i32 = arith.constant 0 : i32
    %c0_i32_0 = arith.constant 0 : i32
    %c0_i32_1 = arith.constant 0 : i32
    return %c0_i32, %c0_i32_0 : i32, i32
  }
  func.func @transform_3(%arg0: i32) -> (i32, i32) {
    %c0_i32 = arith.constant 0 : i32
    %c0_i32_0 = arith.constant 0 : i32
    %c0_i32_1 = arith.constant 0 : i32
    return %c0_i32, %c0_i32_0 : i32, i32
  }
  func.func @transform_4(%arg0: i32) -> (i32, i32) {
    %c0_i32 = arith.constant 0 : i32
    %c0_i32_0 = arith.constant 0 : i32
    %c0_i32_1 = arith.constant 0 : i32
    return %c0_i32, %c0_i32_0 : i32, i32
  }
  func.func @transform_5(%arg0: i32) -> (i32, i32, i32) {
    %c0_i32 = arith.constant 0 : i32
    %c0_i32_0 = arith.constant 0 : i32
    %c0_i32_1 = arith.constant 0 : i32
    return %arg0, %c0_i32, %c0_i32_0 : i32, i32, i32
  }
}

</mosaic_0001>

<llo_original>
// kernel: tpu_custom_call.1
$region0: #{tpu_custom_call.1}
  #allocation0 [shape = 'u32[]', space=smem, size = 0x4, offset = 0x4, fixed_abs, tag = 'smem constant byte address 0x4 - core index']
  #allocation1 [shape = 'u32[144,128]{1,0:T(1,128)}', space=vmem, size = 0x12000, scoped, tag = 'internal scratch']
  %s0 = inlined_call_operand.hbm [shape: f32[8,64,128], index: 0, kind: input, shape index: {}]
  %s1 = inlined_call_operand.vmem [shape: f32[64,4], index: 1, kind: input, shape index: {}]
  %s2 = inlined_call_operand.vmem [shape: f32[1,4], index: 2, kind: input, shape index: {}]
  %s3 = inlined_call_operand.vmem [shape: f32[4,64], index: 3, kind: input, shape index: {}]
  %s4 = inlined_call_operand.vmem [shape: f32[1,64], index: 4, kind: input, shape index: {}]
  %s5 = inlined_call_operand.hbm [shape: f32[8,64,128], index: 5, kind: output, shape index: {}]
  %s6 = sld [smem:[#allocation0]]
  $region34: #{tpu_custom_call.1} parent=0
    _
  %s8 = ssub.s32 1, %s6
  %s9 = scalar_select 0, %s8, %s6
  $region1: #{tpu_custom_call.1} parent=0
    #allocation2 [shape = 'u8[262144]{0}', space=vmem, size = 0x40000, scoped, tag = 'input window, operand 0, single buffered']
    #allocation3 [shape = 's32[1]{0}', space=sflag, size = 0x4, scoped, tag = 'scoped memory for tpu_custom_call.1']
    #allocation4 [shape = 's32[1]{0}', space=sflag, size = 0x4, scoped, tag = 'scoped memory for tpu_custom_call.1']
    #allocation5 [shape = 'u8[262144]{0}', space=vmem, size = 0x40000, scoped, tag = 'output window, operand 0, single buffered']
    %10 = vsyncpa [#allocation3], 0
    %11 = vsyncpa [#allocation4], 0
    // Predicated region
    $region2: #{tpu_custom_call.1} parent=1 // pred_check
      _
    $region3: #{tpu_custom_call.1} parent=1 // pred_check_branch
      %13 = sbr.rel (0) target = $region5
    $region4: #{tpu_custom_call.1} parent=1 // pred_region
      %s15 = ssub.s32 8192, 8192
      %16 = vsyncadd [#allocation3], %s15
      %s17 = sshll.u32 [#allocation2], 4
      %s18 = int_to_ptr.vmem [resolvable:$true] %s17
      %23 = dma.hbm_to_vmem [thread:$0]  %s0, 8192, %s18, [#allocation3], 128, 128, 8
    $region5: #{tpu_custom_call.1} parent=1 // pred_fallthru
      _
    // Predicated region
    $region6: #{tpu_custom_call.1} parent=1 // pred_check
      _
    $region7: #{tpu_custom_call.1} parent=1 // pred_check_branch
      %25 = sbr.rel (0) target = $region9
    $region8: #{tpu_custom_call.1} parent=1 // pred_region
      _
    $region9: #{tpu_custom_call.1} parent=1 // pred_fallthru
      _
    // Predicated region
    $region10: #{tpu_custom_call.1} parent=1 // pred_check
      _
    $region11: #{tpu_custom_call.1} parent=1 // pred_check_branch
      %27 = sbr.rel (0) target = $region13
    $region12: #{tpu_custom_call.1} parent=1 // pred_region
      _
    $region13: #{tpu_custom_call.1} parent=1 // pred_fallthru
      _
    // Predicated region
    $region14: #{tpu_custom_call.1} parent=1 // pred_check
      _
    $region15: #{tpu_custom_call.1} parent=1 // pred_check_branch
      %29 = sbr.rel (0) target = $region17
    $region16: #{tpu_custom_call.1} parent=1 // pred_region
      _
    $region17: #{tpu_custom_call.1} parent=1 // pred_fallthru
      _
    // Predicated region
    $region18: #{tpu_custom_call.1} parent=1 // pred_check
      _
    $region19: #{tpu_custom_call.1} parent=1 // pred_check_branch
      %31 = sbr.rel (0) target = $region21
    $region20: #{tpu_custom_call.1} parent=1 // pred_region
      _
    $region21: #{tpu_custom_call.1} parent=1 // pred_fallthru
      _
    // Predicated region
    $region22: #{tpu_custom_call.1} parent=1 // pred_check
      _
    $region23: #{tpu_custom_call.1} parent=1 // pred_check_branch
      %33 = sbr.rel (0) target = $region25
    $region24: #{tpu_custom_call.1} parent=1 // pred_region
      %34 = dma.done [#allocation3], 8192
    $region25: #{tpu_custom_call.1} parent=1 // pred_fallthru
      _
    %v35 = vld [vmem:[#allocation2] sm:$0xff]
    %v36 = vld [vmem:[#allocation2 + $0x8] sm:$0xff]
    %v37 = vld [vmem:[#allocation2 + $0x10] sm:$0xff]
    %v38 = vld [vmem:[#allocation2 + $0x18] sm:$0xff]
    %v39 = vld [vmem:[#allocation2 + $0x20] sm:$0xff]
    %v40 = vld [vmem:[#allocation2 + $0x28] sm:$0xff]
    %v41 = vld [vmem:[#allocation2 + $0x30] sm:$0xff]
    %v42 = vld [vmem:[#allocation2 + $0x38] sm:$0xff]
    %v43 = vld [vmem:[#allocation2 + $0x40] sm:$0xff]
    %v44 = vld [vmem:[#allocation2 + $0x48] sm:$0xff]
    %v45 = vld [vmem:[#allocation2 + $0x50] sm:$0xff]
    %v46 = vld [vmem:[#allocation2 + $0x58] sm:$0xff]
    %v47 = vld [vmem:[#allocation2 + $0x60] sm:$0xff]
    %v48 = vld [vmem:[#allocation2 + $0x68] sm:$0xff]
    %v49 = vld [vmem:[#allocation2 + $0x70] sm:$0xff]
    %v50 = vld [vmem:[#allocation2 + $0x78] sm:$0xff]
    %v51 = vld [vmem:[#allocation2 + $0x80] sm:$0xff]
    %v52 = vld [vmem:[#allocation2 + $0x88] sm:$0xff]
    %v53 = vld [vmem:[#allocation2 + $0x90] sm:$0xff]
    %v54 = vld [vmem:[#allocation2 + $0x98] sm:$0xff]
    %v55 = vld [vmem:[#allocation2 + $0xa0] sm:$0xff]
    %v56 = vld [vmem:[#allocation2 + $0xa8] sm:$0xff]
    %v57 = vld [vmem:[#allocation2 + $0xb0] sm:$0xff]
    %v58 = vld [vmem:[#allocation2 + $0xb8] sm:$0xff]
    %v59 = vld [vmem:[#allocation2 + $0xc0] sm:$0xff]
    %v60 = vld [vmem:[#allocation2 + $0xc8] sm:$0xff]
    %v61 = vld [vmem:[#allocation2 + $0xd0] sm:$0xff]
    %v62 = vld [vmem:[#allocation2 + $0xd8] sm:$0xff]
    %v63 = vld [vmem:[#allocation2 + $0xe0] sm:$0xff]
    %v64 = vld [vmem:[#allocation2 + $0xe8] sm:$0xff]
    %v65 = vld [vmem:[#allocation2 + $0xf0] sm:$0xff]
    %v66 = vld [vmem:[#allocation2 + $0xf8] sm:$0xff]
    %v67 = vld [vmem:[#allocation2 + $0x100] sm:$0xff]
    %v68 = vld [vmem:[#allocation2 + $0x108] sm:$0xff]
    %v69 = vld [vmem:[#allocation2 + $0x110] sm:$0xff]
    %v70 = vld [vmem:[#allocation2 + $0x118] sm:$0xff]
    %v71 = vld [vmem:[#allocation2 + $0x120] sm:$0xff]
    %v72 = vld [vmem:[#allocation2 + $0x128] sm:$0xff]
    %v73 = vld [vmem:[#allocation2 + $0x130] sm:$0xff]
    %v74 = vld [vmem:[#allocation2 + $0x138] sm:$0xff]
    %v75 = vld [vmem:[#allocation2 + $0x140] sm:$0xff]
    %v76 = vld [vmem:[#allocation2 + $0x148] sm:$0xff]
    %v77 = vld [vmem:[#allocation2 + $0x150] sm:$0xff]
    %v78 = vld [vmem:[#allocation2 + $0x158] sm:$0xff]
    %v79 = vld [vmem:[#allocation2 + $0x160] sm:$0xff]
    %v80 = vld [vmem:[#allocation2 + $0x168] sm:$0xff]
    %v81 = vld [vmem:[#allocation2 + $0x170] sm:$0xff]
    %v82 = vld [vmem:[#allocation2 + $0x178] sm:$0xff]
    %v83 = vld [vmem:[#allocation2 + $0x180] sm:$0xff]
    %v84 = vld [vmem:[#allocation2 + $0x188] sm:$0xff]
    %v85 = vld [vmem:[#allocation2 + $0x190] sm:$0xff]
    %v86 = vld [vmem:[#allocation2 + $0x198] sm:$0xff]
    %v87 = vld [vmem:[#allocation2 + $0x1a0] sm:$0xff]
    %v88 = vld [vmem:[#allocation2 + $0x1a8] sm:$0xff]
    %v89 = vld [vmem:[#allocation2 + $0x1b0] sm:$0xff]
    %v90 = vld [vmem:[#allocation2 + $0x1b8] sm:$0xff]
    %v91 = vld [vmem:[#allocation2 + $0x1c0] sm:$0xff]
    %v92 = vld [vmem:[#allocation2 + $0x1c8] sm:$0xff]
    %v93 = vld [vmem:[#allocation2 + $0x1d0] sm:$0xff]
    %v94 = vld [vmem:[#allocation2 + $0x1d8] sm:$0xff]
    %v95 = vld [vmem:[#allocation2 + $0x1e0] sm:$0xff]
    %v96 = vld [vmem:[#allocation2 + $0x1e8] sm:$0xff]
    %v97 = vld [vmem:[#allocation2 + $0x1f0] sm:$0xff]
    %v98 = vld [vmem:[#allocation2 + $0x1f8] sm:$0xff]
    %99 = vadd.xlane.f32.xlu0 %v35
    %v100 = vpop.xlane.xlu0 %99
    %101 = vadd.xlane.f32.xlu0 %v36
    %v102 = vpop.xlane.xlu0 %101
    %103 = vadd.xlane.f32.xlu0 %v37
    %v104 = vpop.xlane.xlu0 %103
    %105 = vadd.xlane.f32.xlu0 %v38
    %v106 = vpop.xlane.xlu0 %105
    %107 = vadd.xlane.f32.xlu0 %v39
    %v108 = vpop.xlane.xlu0 %107
    %109 = vadd.xlane.f32.xlu0 %v40
    %v110 = vpop.xlane.xlu0 %109
    %111 = vadd.xlane.f32.xlu0 %v41
    %v112 = vpop.xlane.xlu0 %111
    %113 = vadd.xlane.f32.xlu0 %v42
    %v114 = vpop.xlane.xlu0 %113
    %115 = vadd.xlane.f32.xlu0 %v43
    %v116 = vpop.xlane.xlu0 %115
    %117 = vadd.xlane.f32.xlu0 %v44
    %v118 = vpop.xlane.xlu0 %117
    %119 = vadd.xlane.f32.xlu0 %v45
    %v120 = vpop.xlane.xlu0 %119
    %121 = vadd.xlane.f32.xlu0 %v46
    %v122 = vpop.xlane.xlu0 %121
    %123 = vadd.xlane.f32.xlu0 %v47
    %v124 = vpop.xlane.xlu0 %123
    %125 = vadd.xlane.f32.xlu0 %v48
    %v126 = vpop.xlane.xlu0 %125
    %127 = vadd.xlane.f32.xlu0 %v49
    %v128 = vpop.xlane.xlu0 %127
    %129 = vadd.xlane.f32.xlu0 %v50
    %v130 = vpop.xlane.xlu0 %129
    %131 = vadd.xlane.f32.xlu0 %v51
    %v132 = vpop.xlane.xlu0 %131
    %133 = vadd.xlane.f32.xlu0 %v52
    %v134 = vpop.xlane.xlu0 %133
    %135 = vadd.xlane.f32.xlu0 %v53
    %v136 = vpop.xlane.xlu0 %135
    %137 = vadd.xlane.f32.xlu0 %v54
    %v138 = vpop.xlane.xlu0 %137
    %139 = vadd.xlane.f32.xlu0 %v55
    %v140 = vpop.xlane.xlu0 %139
    %141 = vadd.xlane.f32.xlu0 %v56
    %v142 = vpop.xlane.xlu0 %141
    %143 = vadd.xlane.f32.xlu0 %v57
    %v144 = vpop.xlane.xlu0 %143
    %145 = vadd.xlane.f32.xlu0 %v58
    %v146 = vpop.xlane.xlu0 %145
    %147 = vadd.xlane.f32.xlu0 %v59
    %v148 = vpop.xlane.xlu0 %147
    %149 = vadd.xlane.f32.xlu0 %v60
    %v150 = vpop.xlane.xlu0 %149
    %151 = vadd.xlane.f32.xlu0 %v61
    %v152 = vpop.xlane.xlu0 %151
    %153 = vadd.xlane.f32.xlu0 %v62
    %v154 = vpop.xlane.xlu0 %153
    %155 = vadd.xlane.f32.xlu0 %v63
    %v156 = vpop.xlane.xlu0 %155
    %157 = vadd.xlane.f32.xlu0 %v64
    %v158 = vpop.xlane.xlu0 %157
    %159 = vadd.xlane.f32.xlu0 %v65
    %v160 = vpop.xlane.xlu0 %159
    %161 = vadd.xlane.f32.xlu0 %v66
    %v162 = vpop.xlane.xlu0 %161
    %163 = vadd.xlane.f32.xlu0 %v67
    %v164 = vpop.xlane.xlu0 %163
    %165 = vadd.xlane.f32.xlu0 %v68
    %v166 = vpop.xlane.xlu0 %165
    %167 = vadd.xlane.f32.xlu0 %v69
    %v168 = vpop.xlane.xlu0 %167
    %169 = vadd.xlane.f32.xlu0 %v70
    %v170 = vpop.xlane.xlu0 %169
    %171 = vadd.xlane.f32.xlu0 %v71
    %v172 = vpop.xlane.xlu0 %171
    %173 = vadd.xlane.f32.xlu0 %v72
    %v174 = vpop.xlane.xlu0 %173
    %175 = vadd.xlane.f32.xlu0 %v73
    %v176 = vpop.xlane.xlu0 %175
    %177 = vadd.xlane.f32.xlu0 %v74
    %v178 = vpop.xlane.xlu0 %177
    %179 = vadd.xlane.f32.xlu0 %v75
    %v180 = vpop.xlane.xlu0 %179
    %181 = vadd.xlane.f32.xlu0 %v76
    %v182 = vpop.xlane.xlu0 %181
    %183 = vadd.xlane.f32.xlu0 %v77
    %v184 = vpop.xlane.xlu0 %183
    %185 = vadd.xlane.f32.xlu0 %v78
    %v186 = vpop.xlane.xlu0 %185
    %187 = vadd.xlane.f32.xlu0 %v79
    %v188 = vpop.xlane.xlu0 %187
    %189 = vadd.xlane.f32.xlu0 %v80
    %v190 = vpop.xlane.xlu0 %189
    %191 = vadd.xlane.f32.xlu0 %v81
    %v192 = vpop.xlane.xlu0 %191
    %193 = vadd.xlane.f32.xlu0 %v82
    %v194 = vpop.xlane.xlu0 %193
    %195 = vadd.xlane.f32.xlu0 %v83
    %v196 = vpop.xlane.xlu0 %195
    %197 = vadd.xlane.f32.xlu0 %v84
    %v198 = vpop.xlane.xlu0 %197
    %199 = vadd.xlane.f32.xlu0 %v85
    %v200 = vpop.xlane.xlu0 %199
    %201 = vadd.xlane.f32.xlu0 %v86
    %v202 = vpop.xlane.xlu0 %201
    %203 = vadd.xlane.f32.xlu0 %v87
    %v204 = vpop.xlane.xlu0 %203
    %205 = vadd.xlane.f32.xlu0 %v88
    %v206 = vpop.xlane.xlu0 %205
    %207 = vadd.xlane.f32.xlu0 %v89
    %v208 = vpop.xlane.xlu0 %207
    %209 = vadd.xlane.f32.xlu0 %v90
    %v210 = vpop.xlane.xlu0 %209
    %211 = vadd.xlane.f32.xlu0 %v91
    %v212 = vpop.xlane.xlu0 %211
    %213 = vadd.xlane.f32.xlu0 %v92
    %v214 = vpop.xlane.xlu0 %213
    %215 = vadd.xlane.f32.xlu0 %v93
    %v216 = vpop.xlane.xlu0 %215
    %217 = vadd.xlane.f32.xlu0 %v94
    %v218 = vpop.xlane.xlu0 %217
    %219 = vadd.xlane.f32.xlu0 %v95
    %v220 = vpop.xlane.xlu0 %219
    %221 = vadd.xlane.f32.xlu0 %v96
    %v222 = vpop.xlane.xlu0 %221
    %223 = vadd.xlane.f32.xlu0 %v97
    %v224 = vpop.xlane.xlu0 %223
    %225 = vadd.xlane.f32.xlu0 %v98
    %v226 = vpop.xlane.xlu0 %225
    %v227 = vrcp.pop 128.0
    %v228 = vmul.f32 %v100, %v227
    %v229 = vmul.f32 %v102, %v227
    %v230 = vmul.f32 %v104, %v227
    %v231 = vmul.f32 %v106, %v227
    %v232 = vmul.f32 %v108, %v227
    %v233 = vmul.f32 %v110, %v227
    %v234 = vmul.f32 %v112, %v227
    %v235 = vmul.f32 %v114, %v227
    %v236 = vmul.f32 %v116, %v227
    %v237 = vmul.f32 %v118, %v227
    %v238 = vmul.f32 %v120, %v227
    %v239 = vmul.f32 %v122, %v227
    %v240 = vmul.f32 %v124, %v227
    %v241 = vmul.f32 %v126, %v227
    %v242 = vmul.f32 %v128, %v227
    %v243 = vmul.f32 %v130, %v227
    %v244 = vmul.f32 %v132, %v227
    %v245 = vmul.f32 %v134, %v227
    %v246 = vmul.f32 %v136, %v227
    %v247 = vmul.f32 %v138, %v227
    %v248 = vmul.f32 %v140, %v227
    %v249 = vmul.f32 %v142, %v227
    %v250 = vmul.f32 %v144, %v227
    %v251 = vmul.f32 %v146, %v227
    %v252 = vmul.f32 %v148, %v227
    %v253 = vmul.f32 %v150, %v227
    %v254 = vmul.f32 %v152, %v227
    %v255 = vmul.f32 %v154, %v227
    %v256 = vmul.f32 %v156, %v227
    %v257 = vmul.f32 %v158, %v227
    %v258 = vmul.f32 %v160, %v227
    %v259 = vmul.f32 %v162, %v227
    %v260 = vmul.f32 %v164, %v227
    %v261 = vmul.f32 %v166, %v227
    %v262 = vmul.f32 %v168, %v227
    %v263 = vmul.f32 %v170, %v227
    %v264 = vmul.f32 %v172, %v227
    %v265 = vmul.f32 %v174, %v227
    %v266 = vmul.f32 %v176, %v227
    %v267 = vmul.f32 %v178, %v227
    %v268 = vmul.f32 %v180, %v227
    %v269 = vmul.f32 %v182, %v227
    %v270 = vmul.f32 %v184, %v227
    %v271 = vmul.f32 %v186, %v227
    %v272 = vmul.f32 %v188, %v227
    %v273 = vmul.f32 %v190, %v227
    %v274 = vmul.f32 %v192, %v227
    %v275 = vmul.f32 %v194, %v227
    %v276 = vmul.f32 %v196, %v227
    %v277 = vmul.f32 %v198, %v227
    %v278 = vmul.f32 %v200, %v227
    %v279 = vmul.f32 %v202, %v227
    %v280 = vmul.f32 %v204, %v227
    %v281 = vmul.f32 %v206, %v227
    %v282 = vmul.f32 %v208, %v227
    %v283 = vmul.f32 %v210, %v227
    %v284 = vmul.f32 %v212, %v227
    %v285 = vmul.f32 %v214, %v227
    %v286 = vmul.f32 %v216, %v227
    %v287 = vmul.f32 %v218, %v227
    %v288 = vmul.f32 %v220, %v227
    %v289 = vmul.f32 %v222, %v227
    %v290 = vmul.f32 %v224, %v227
    %v291 = vmul.f32 %v226, %v227
    %v292 = vld [vmem:[%s1] sm:$0xff]
    %v293 = vld [vmem:[%s1 + $0x8] sm:$0xff]
    %v294 = vld [vmem:[%s1 + $0x10] sm:$0xff]
    %v295 = vld [vmem:[%s1 + $0x18] sm:$0xff]
    %v296 = vld [vmem:[%s1 + $0x20] sm:$0xff]
    %v297 = vld [vmem:[%s1 + $0x28] sm:$0xff]
    %v298 = vld [vmem:[%s1 + $0x30] sm:$0xff]
    %v299 = vld [vmem:[%s1 + $0x38] sm:$0xff]
    %v300 = vld [vmem:[%s2] sm:$0x1]
    %v302 = vlaneseq
    %v303 = vshrl.u32 %v302, 7
    %v304 = vsub.s32 0, %v303
    %v305 = vrot.slane %v300, %v304
    %v371 = vlaneseq
    %v372 = vand.u32 %v371, 127
    %v373 = vlaneseq
    %v374 = vshrl.u32 %v373, 7
    %v375 = vsub.s32 %v372, %v374
    %v376 = vrot.slane %v228, %v375
    %v377 = vadd.s32 %v372, 4294967288
    %v378 = vlaneseq
    %v379 = vshrl.u32 %v378, 7
    %v380 = vsub.s32 %v377, %v379
    %v381 = vrot.slane %v229, %v380
    %vm382 = vcmask 130112
    %v383 = vsel %vm382, %v381, %v376
    %v384 = vadd.s32 %v372, 4294967280
    %v385 = vlaneseq
    %v386 = vshrl.u32 %v385, 7
    %v387 = vsub.s32 %v384, %v386
    %v388 = vrot.slane %v230, %v387
    %vm389 = vcmask 195712
    %v390 = vsel %vm389, %v388, %v383
    %v391 = vadd.s32 %v372, 4294967272
    %v392 = vlaneseq
    %v393 = vshrl.u32 %v392, 7
    %v394 = vsub.s32 %v391, %v393
    %v395 = vrot.slane %v231, %v394
    %vm396 = vcmask 261312
    %v397 = vsel %vm396, %v395, %v390
    %v398 = vadd.s32 %v372, 4294967264
    %v399 = vlaneseq
    %v400 = vshrl.u32 %v399, 7
    %v401 = vsub.s32 %v398, %v400
    %v402 = vrot.slane %v232, %v401
    %vm403 = vcmask 326912
    %v404 = vsel %vm403, %v402, %v397
    %v405 = vadd.s32 %v372, 4294967256
    %v406 = vlaneseq
    %v407 = vshrl.u32 %v406, 7
    %v408 = vsub.s32 %v405, %v407
    %v409 = vrot.slane %v233, %v408
    %vm410 = vcmask 392512
    %v411 = vsel %vm410, %v409, %v404
    %v412 = vadd.s32 %v372, 4294967248
    %v413 = vlaneseq
    %v414 = vshrl.u32 %v413, 7
    %v415 = vsub.s32 %v412, %v414
    %v416 = vrot.slane %v234, %v415
    %vm417 = vcmask 458112
    %v418 = vsel %vm417, %v416, %v411
    %v419 = vadd.s32 %v372, 4294967240
    %v420 = vlaneseq
    %v421 = vshrl.u32 %v420, 7
    %v422 = vsub.s32 %v419, %v421
    %v423 = vrot.slane %v235, %v422
    %vm424 = vcmask 523712
    %v425 = vsel %vm424, %v423, %v418
    %v426 = vlaneseq
    %v427 = vshrl.u32 %v426, 7
    %v428 = vsub.s32 %v372, %v427
    %v429 = vrot.slane %v236, %v428
    %v430 = vlaneseq
    %v431 = vshrl.u32 %v430, 7
    %v432 = vsub.s32 %v377, %v431
    %v433 = vrot.slane %v237, %v432
    %v434 = vsel %vm382, %v433, %v429
    %v435 = vlaneseq
    %v436 = vshrl.u32 %v435, 7
    %v437 = vsub.s32 %v384, %v436
    %v438 = vrot.slane %v238, %v437
    %v439 = vsel %vm389, %v438, %v434
    %v440 = vlaneseq
    %v441 = vshrl.u32 %v440, 7
    %v442 = vsub.s32 %v391, %v441
    %v443 = vrot.slane %v239, %v442
    %v444 = vsel %vm396, %v443, %v439
    %v445 = vlaneseq
    %v446 = vshrl.u32 %v445, 7
    %v447 = vsub.s32 %v398, %v446
    %v448 = vrot.slane %v240, %v447
    %v449 = vsel %vm403, %v448, %v444
    %v450 = vlaneseq
    %v451 = vshrl.u32 %v450, 7
    %v452 = vsub.s32 %v405, %v451
    %v453 = vrot.slane %v241, %v452
    %v454 = vsel %vm410, %v453, %v449
    %v455 = vlaneseq
    %v456 = vshrl.u32 %v455, 7
    %v457 = vsub.s32 %v412, %v456
    %v458 = vrot.slane %v242, %v457
    %v459 = vsel %vm417, %v458, %v454
    %v460 = vlaneseq
    %v461 = vshrl.u32 %v460, 7
    %v462 = vsub.s32 %v419, %v461
    %v463 = vrot.slane %v243, %v462
    %v464 = vsel %vm424, %v463, %v459
    %v465 = vlaneseq
    %v466 = vshrl.u32 %v465, 7
    %v467 = vsub.s32 %v372, %v466
    %v468 = vrot.slane %v244, %v467
    %v469 = vlaneseq
    %v470 = vshrl.u32 %v469, 7
    %v471 = vsub.s32 %v377, %v470
    %v472 = vrot.slane %v245, %v471
    %v473 = vsel %vm382, %v472, %v468
    %v474 = vlaneseq
    %v475 = vshrl.u32 %v474, 7
    %v476 = vsub.s32 %v384, %v475
    %v477 = vrot.slane %v246, %v476
    %v478 = vsel %vm389, %v477, %v473
    %v479 = vlaneseq
    %v480 = vshrl.u32 %v479, 7
    %v481 = vsub.s32 %v391, %v480
    %v482 = vrot.slane %v247, %v481
    %v483 = vsel %vm396, %v482, %v478
    %v484 = vlaneseq
    %v485 = vshrl.u32 %v484, 7
    %v486 = vsub.s32 %v398, %v485
    %v487 = vrot.slane %v248, %v486
    %v488 = vsel %vm403, %v487, %v483
    %v489 = vlaneseq
    %v490 = vshrl.u32 %v489, 7
    %v491 = vsub.s32 %v405, %v490
    %v492 = vrot.slane %v249, %v491
    %v493 = vsel %vm410, %v492, %v488
    %v494 = vlaneseq
    %v495 = vshrl.u32 %v494, 7
    %v496 = vsub.s32 %v412, %v495
    %v497 = vrot.slane %v250, %v496
    %v498 = vsel %vm417, %v497, %v493
    %v499 = vlaneseq
    %v500 = vshrl.u32 %v499, 7
    %v501 = vsub.s32 %v419, %v500
    %v502 = vrot.slane %v251, %v501
    %v503 = vsel %vm424, %v502, %v498
    %v504 = vlaneseq
    %v505 = vshrl.u32 %v504, 7
    %v506 = vsub.s32 %v372, %v505
    %v507 = vrot.slane %v252, %v506
    %v508 = vlaneseq
    %v509 = vshrl.u32 %v508, 7
    %v510 = vsub.s32 %v377, %v509
    %v511 = vrot.slane %v253, %v510
    %v512 = vsel %vm382, %v511, %v507
    %v513 = vlaneseq
    %v514 = vshrl.u32 %v513, 7
    %v515 = vsub.s32 %v384, %v514
    %v516 = vrot.slane %v254, %v515
    %v517 = vsel %vm389, %v516, %v512
    %v518 = vlaneseq
    %v519 = vshrl.u32 %v518, 7
    %v520 = vsub.s32 %v391, %v519
    %v521 = vrot.slane %v255, %v520
    %v522 = vsel %vm396, %v521, %v517
    %v523 = vlaneseq
    %v524 = vshrl.u32 %v523, 7
    %v525 = vsub.s32 %v398, %v524
    %v526 = vrot.slane %v256, %v525
    %v527 = vsel %vm403, %v526, %v522
    %v528 = vlaneseq
    %v529 = vshrl.u32 %v528, 7
    %v530 = vsub.s32 %v405, %v529
    %v531 = vrot.slane %v257, %v530
    %v532 = vsel %vm410, %v531, %v527
    %v533 = vlaneseq
    %v534 = vshrl.u32 %v533, 7
    %v535 = vsub.s32 %v412, %v534
    %v536 = vrot.slane %v258, %v535
    %v537 = vsel %vm417, %v536, %v532
    %v538 = vlaneseq
    %v539 = vshrl.u32 %v538, 7
    %v540 = vsub.s32 %v419, %v539
    %v541 = vrot.slane %v259, %v540
    %v542 = vsel %vm424, %v541, %v537
    %v543 = vlaneseq
    %v544 = vshrl.u32 %v543, 7
    %v545 = vsub.s32 %v372, %v544
    %v546 = vrot.slane %v260, %v545
    %v547 = vlaneseq
    %v548 = vshrl.u32 %v547, 7
    %v549 = vsub.s32 %v377, %v548
    %v550 = vrot.slane %v261, %v549
    %v551 = vsel %vm382, %v550, %v546
    %v552 = vlaneseq
    %v553 = vshrl.u32 %v552, 7
    %v554 = vsub.s32 %v384, %v553
    %v555 = vrot.slane %v262, %v554
    %v556 = vsel %vm389, %v555, %v551
    %v557 = vlaneseq
    %v558 = vshrl.u32 %v557, 7
    %v559 = vsub.s32 %v391, %v558
    %v560 = vrot.slane %v263, %v559
    %v561 = vsel %vm396, %v560, %v556
    %v562 = vlaneseq
    %v563 = vshrl.u32 %v562, 7
    %v564 = vsub.s32 %v398, %v563
    %v565 = vrot.slane %v264, %v564
    %v566 = vsel %vm403, %v565, %v561
    %v567 = vlaneseq
    %v568 = vshrl.u32 %v567, 7
    %v569 = vsub.s32 %v405, %v568
    %v570 = vrot.slane %v265, %v569
    %v571 = vsel %vm410, %v570, %v566
    %v572 = vlaneseq
    %v573 = vshrl.u32 %v572, 7
    %v574 = vsub.s32 %v412, %v573
    %v575 = vrot.slane %v266, %v574
    %v576 = vsel %vm417, %v575, %v571
    %v577 = vlaneseq
    %v578 = vshrl.u32 %v577, 7
    %v579 = vsub.s32 %v419, %v578
    %v580 = vrot.slane %v267, %v579
    %v581 = vsel %vm424, %v580, %v576
    %v582 = vlaneseq
    %v583 = vshrl.u32 %v582, 7
    %v584 = vsub.s32 %v372, %v583
    %v585 = vrot.slane %v268, %v584
    %v586 = vlaneseq
    %v587 = vshrl.u32 %v586, 7
    %v588 = vsub.s32 %v377, %v587
    %v589 = vrot.slane %v269, %v588
    %v590 = vsel %vm382, %v589, %v585
    %v591 = vlaneseq
    %v592 = vshrl.u32 %v591, 7
    %v593 = vsub.s32 %v384, %v592
    %v594 = vrot.slane %v270, %v593
    %v595 = vsel %vm389, %v594, %v590
    %v596 = vlaneseq
    %v597 = vshrl.u32 %v596, 7
    %v598 = vsub.s32 %v391, %v597
    %v599 = vrot.slane %v271, %v598
    %v600 = vsel %vm396, %v599, %v595
    %v601 = vlaneseq
    %v602 = vshrl.u32 %v601, 7
    %v603 = vsub.s32 %v398, %v602
    %v604 = vrot.slane %v272, %v603
    %v605 = vsel %vm403, %v604, %v600
    %v606 = vlaneseq
    %v607 = vshrl.u32 %v606, 7
    %v608 = vsub.s32 %v405, %v607
    %v609 = vrot.slane %v273, %v608
    %v610 = vsel %vm410, %v609, %v605
    %v611 = vlaneseq
    %v612 = vshrl.u32 %v611, 7
    %v613 = vsub.s32 %v412, %v612
    %v614 = vrot.slane %v274, %v613
    %v615 = vsel %vm417, %v614, %v610
    %v616 = vlaneseq
    %v617 = vshrl.u32 %v616, 7
    %v618 = vsub.s32 %v419, %v617
    %v619 = vrot.slane %v275, %v618
    %v620 = vsel %vm424, %v619, %v615
    %v621 = vlaneseq
    %v622 = vshrl.u32 %v621, 7
    %v623 = vsub.s32 %v372, %v622
    %v624 = vrot.slane %v276, %v623
    %v625 = vlaneseq
    %v626 = vshrl.u32 %v625, 7
    %v627 = vsub.s32 %v377, %v626
    %v628 = vrot.slane %v277, %v627
    %v629 = vsel %vm382, %v628, %v624
    %v630 = vlaneseq
    %v631 = vshrl.u32 %v630, 7
    %v632 = vsub.s32 %v384, %v631
    %v633 = vrot.slane %v278, %v632
    %v634 = vsel %vm389, %v633, %v629
    %v635 = vlaneseq
    %v636 = vshrl.u32 %v635, 7
    %v637 = vsub.s32 %v391, %v636
    %v638 = vrot.slane %v279, %v637
    %v639 = vsel %vm396, %v638, %v634
    %v640 = vlaneseq
    %v641 = vshrl.u32 %v640, 7
    %v642 = vsub.s32 %v398, %v641
    %v643 = vrot.slane %v280, %v642
    %v644 = vsel %vm403, %v643, %v639
    %v645 = vlaneseq
    %v646 = vshrl.u32 %v645, 7
    %v647 = vsub.s32 %v405, %v646
    %v648 = vrot.slane %v281, %v647
    %v649 = vsel %vm410, %v648, %v644
    %v650 = vlaneseq
    %v651 = vshrl.u32 %v650, 7
    %v652 = vsub.s32 %v412, %v651
    %v653 = vrot.slane %v282, %v652
    %v654 = vsel %vm417, %v653, %v649
    %v655 = vlaneseq
    %v656 = vshrl.u32 %v655, 7
    %v657 = vsub.s32 %v419, %v656
    %v658 = vrot.slane %v283, %v657
    %v659 = vsel %vm424, %v658, %v654
    %v660 = vlaneseq
    %v661 = vshrl.u32 %v660, 7
    %v662 = vsub.s32 %v372, %v661
    %v663 = vrot.slane %v284, %v662
    %v664 = vlaneseq
    %v665 = vshrl.u32 %v664, 7
    %v666 = vsub.s32 %v377, %v665
    %v667 = vrot.slane %v285, %v666
    %v668 = vsel %vm382, %v667, %v663
    %v669 = vlaneseq
    %v670 = vshrl.u32 %v669, 7
    %v671 = vsub.s32 %v384, %v670
    %v672 = vrot.slane %v286, %v671
    %v673 = vsel %vm389, %v672, %v668
    %v674 = vlaneseq
    %v675 = vshrl.u32 %v674, 7
    %v676 = vsub.s32 %v391, %v675
    %v677 = vrot.slane %v287, %v676
    %v678 = vsel %vm396, %v677, %v673
    %v679 = vlaneseq
    %v680 = vshrl.u32 %v679, 7
    %v681 = vsub.s32 %v398, %v680
    %v682 = vrot.slane %v288, %v681
    %v683 = vsel %vm403, %v682, %v678
    %v684 = vlaneseq
    %v685 = vshrl.u32 %v684, 7
    %v686 = vsub.s32 %v405, %v685
    %v687 = vrot.slane %v289, %v686
    %v688 = vsel %vm410, %v687, %v683
    %v689 = vlaneseq
    %v690 = vshrl.u32 %v689, 7
    %v691 = vsub.s32 %v412, %v690
    %v692 = vrot.slane %v290, %v691
    %v693 = vsel %vm417, %v692, %v688
    %v694 = vlaneseq
    %v695 = vshrl.u32 %v694, 7
    %v696 = vsub.s32 %v419, %v695
    %v697 = vrot.slane %v291, %v696
    %v698 = vsel %vm424, %v697, %v693
    %vm699 = vcmask 1041409
    %v700 = vsel %vm699, %v464, %v425
    %vm701 = vcmask 1042434
    %v702 = vsel %vm701, %v503, %v700
    %vm703 = vcmask 1043459
    %v704 = vsel %vm703, %v542, %v702
    %vm705 = vcmask 1044484
    %v706 = vsel %vm705, %v581, %v704
    %vm707 = vcmask 1045509
    %v708 = vsel %vm707, %v620, %v706
    %vm709 = vcmask 1046534
    %v710 = vsel %vm709, %v659, %v708
    %vm711 = vcmask 1047559
    %v712 = vsel %vm711, %v698, %v710
    %vm713 = vcmask 523264
    %v714 = vsel %vm713, %v712, 0
    %716 = vmatprep.subr.mxu0 0.0
    %717 = vmatpush1.msra.mxu0 %v292
    %718 = vmatprep.subr.mxu0 0.0
    %719 = vmatpush1.msra.mxu0 %v293
    %720 = vmatprep.subr.mxu0 0.0
    %721 = vmatpush1.msra.mxu0 %v294
    %722 = vmatprep.subr.mxu0 0.0
    %723 = vmatpush1.msra.mxu0 %v295
    %724 = vmatprep.subr.mxu0 0.0
    %725 = vmatpush1.msra.mxu0 %v296
    %726 = vmatprep.subr.mxu0 0.0
    %727 = vmatpush1.msra.mxu0 %v297
    %728 = vmatprep.subr.mxu0 0.0
    %729 = vmatpush1.msra.mxu0 %v298
    %730 = vmatprep.subr.mxu0 0.0
    %731 = vmatpush1.msra.mxu0 %v299
    %732 = vmatprep.subr.mxu0 0.0
    %733 = vmatpush1.msra.mxu0 0.0
    %734 = vmatprep.subr.mxu0 0.0
    %735 = vmatpush1.msra.mxu0 0.0
    %736 = vmatprep.subr.mxu0 0.0
    %737 = vmatpush1.msra.mxu0 0.0
    %738 = vmatprep.subr.mxu0 0.0
    %739 = vmatpush1.msra.mxu0 0.0
    %740 = vmatprep.subr.mxu0 0.0
    %741 = vmatpush1.msra.mxu0 0.0
    %742 = vmatprep.subr.mxu0 0.0
    %743 = vmatpush1.msra.mxu0 0.0
    %744 = vmatprep.subr.mxu0 0.0
    %745 = vmatpush1.msra.mxu0 0.0
    %746 = vmatprep.subr.mxu0 0.0
    %747 = vmatpush1.msra.mxu0 0.0
    %748 = vmatprep.subr.mxu0 0.0
    %749 = vmatpush1.msra.mxu0 0.0
    %750 = vmatprep.subr.mxu0 0.0
    %751 = vmatpush1.msra.mxu0 0.0
    %752 = vmatprep.subr.mxu0 0.0
    %753 = vmatpush1.msra.mxu0 0.0
    %754 = vmatprep.subr.mxu0 0.0
    %755 = vmatpush1.msra.mxu0 0.0
    %756 = vmatprep.subr.mxu0 0.0
    %757 = vmatpush1.msra.mxu0 0.0
    %758 = vmatprep.subr.mxu0 0.0
    %759 = vmatpush1.msra.mxu0 0.0
    %760 = vmatprep.subr.mxu0 0.0
    %761 = vmatpush1.msra.mxu0 0.0
    %762 = vmatprep.subr.mxu0 0.0
    %763 = vmatpush1.msra.mxu0 0.0
    %764 = vmatprep.subr.mxu0 0.0
    %765 = vmatpush1.msra.mxu0 0.0
    %766 = vmatprep.subr.mxu0 0.0
    %767 = vmatpush1.msra.mxu0 0.0
    %768 = vmatprep.subr.mxu0 0.0
    %769 = vmatpush1.msra.mxu0 0.0
    %770 = vmatprep.subr.mxu0 0.0
    %771 = vmatpush1.msra.mxu0 0.0
    %772 = vmatprep.subr.mxu0 0.0
    %773 = vmatpush1.msra.mxu0 0.0
    %774 = vmatprep.subr.mxu0 0.0
    %775 = vmatpush1.msra.mxu0 0.0
    %776 = vmatprep.subr.mxu0 0.0
    %777 = vmatpush1.msra.mxu0 0.0
    %778 = vmatprep.subr.mxu0 0.0
    %779 = vmatpush1.msra.mxu0 0.0
    %780 = vmatprep.mubr.f32.mxu0 0.0
    %781 = vmatmul.mubr.f32.gmra.mrb[0].mxu0 %v714
    %v782 = vpop.f32.mrb[0].mxu0
    %v783 = vadd.f32 %v305, %v782
    %v784 = vpop.f32.mrb[0].mxu0
    %785 = vdwg.mxu0
    %v786 = vmax.f32 %v783, 0.0
    %v787 = vld [vmem:[%s3] sm:$0xf]
    %v788 = vld [vmem:[%s4] sm:$0x1]
    %v790 = vlaneseq
    %v791 = vshrl.u32 %v790, 7
    %v792 = vsub.s32 0, %v791
    %v793 = vrot.slane %v788, %v792
    %vm795 = vcmask 31744
    %v797 = vsel %vm795, %v786, 0
    %vm799 = vcmask 1043456
    %v801 = vsel %vm799, %v787, 0
    %803 = vmatprep.subr.mxu0 0.0
    %804 = vmatpush1.msra.mxu0 %v801
    %805 = vmatprep.subr.mxu0 0.0
    %806 = vmatpush1.msra.mxu0 0.0
    %807 = vmatprep.subr.mxu0 0.0
    %808 = vmatpush1.msra.mxu0 0.0
    %809 = vmatprep.subr.mxu0 0.0
    %810 = vmatpush1.msra.mxu0 0.0
    %811 = vmatprep.subr.mxu0 0.0
    %812 = vmatpush1.msra.mxu0 0.0
    %813 = vmatprep.subr.mxu0 0.0
    %814 = vmatpush1.msra.mxu0 0.0
    %815 = vmatprep.subr.mxu0 0.0
    %816 = vmatpush1.msra.mxu0 0.0
    %817 = vmatprep.subr.mxu0 0.0
    %818 = vmatpush1.msra.mxu0 0.0
    %819 = vmatprep.subr.mxu0 0.0
    %820 = vmatpush1.msra.mxu0 0.0
    %821 = vmatprep.subr.mxu0 0.0
    %822 = vmatpush1.msra.mxu0 0.0
    %823 = vmatprep.subr.mxu0 0.0
    %824 = vmatpush1.msra.mxu0 0.0
    %825 = vmatprep.subr.mxu0 0.0
    %826 = vmatpush1.msra.mxu0 0.0
    %827 = vmatprep.subr.mxu0 0.0
    %828 = vmatpush1.msra.mxu0 0.0
    %829 = vmatprep.subr.mxu0 0.0
    %830 = vmatpush1.msra.mxu0 0.0
    %831 = vmatprep.subr.mxu0 0.0
    %832 = vmatpush1.msra.mxu0 0.0
    %833 = vmatprep.subr.mxu0 0.0
    %834 = vmatpush1.msra.mxu0 0.0
    %835 = vmatprep.subr.mxu0 0.0
    %836 = vmatpush1.msra.mxu0 0.0
    %837 = vmatprep.subr.mxu0 0.0
    %838 = vmatpush1.msra.mxu0 0.0
    %839 = vmatprep.subr.mxu0 0.0
    %840 = vmatpush1.msra.mxu0 0.0
    %841 = vmatprep.subr.mxu0 0.0
    %842 = vmatpush1.msra.mxu0 0.0
    %843 = vmatprep.subr.mxu0 0.0
    %844 = vmatpush1.msra.mxu0 0.0
    %845 = vmatprep.subr.mxu0 0.0
    %846 = vmatpush1.msra.mxu0 0.0
    %847 = vmatprep.subr.mxu0 0.0
    %848 = vmatpush1.msra.mxu0 0.0
    %849 = vmatprep.subr.mxu0 0.0
    %850 = vmatpush1.msra.mxu0 0.0
    %851 = vmatprep.subr.mxu0 0.0
    %852 = vmatpush1.msra.mxu0 0.0
    %853 = vmatprep.subr.mxu0 0.0
    %854 = vmatpush1.msra.mxu0 0.0
    %855 = vmatprep.subr.mxu0 0.0
    %856 = vmatpush1.msra.mxu0 0.0
    %857 = vmatprep.subr.mxu0 0.0
    %858 = vmatpush1.msra.mxu0 0.0
    %859 = vmatprep.subr.mxu0 0.0
    %860 = vmatpush1.msra.mxu0 0.0
    %861 = vmatprep.subr.mxu0 0.0
    %862 = vmatpush1.msra.mxu0 0.0
    %863 = vmatprep.subr.mxu0 0.0
    %864 = vmatpush1.msra.mxu0 0.0
    %865 = vmatprep.subr.mxu0 0.0
    %866 = vmatpush1.msra.mxu0 0.0
    %867 = vmatprep.mubr.f32.mxu0 0.0
    %868 = vmatmul.mubr.f32.gmra.mrb[0].mxu0 %v797
    %v869 = vpop.f32.mrb[0].mxu0
    %v870 = vadd.f32 %v793, %v869
    %v871 = vpop.f32.mrb[0].mxu0
    %872 = vdwg.mxu0
    %v873 = vxor.u32 %v870, 2147483648
    %v874 = vmul.f32 %v873, 1.442695
    %v875 = vpow.pop %v874
    %v876 = vadd.f32 %v875, 1.0
    %v877 = vrcp.pop %v876
    %v878 = vmul.f32 1.0, %v877
    %v879 = vlaneseq
    %v880 = vshrl.u32 %v879, 7
    %v881 = vsub.s32 0, %v880
    %v882 = vrot.slane %v878, %v881
    %884 = vbcast.lane.b32.xlu0 %v882, 256
    %v885 = vpop.permute.xlu0 %884
    %s887 = sor.u32 256, 8
    %888 = vbcast.lane.b32.xlu0 %v882, %s887
    %v889 = vpop.permute.xlu0 %888
    %s891 = sor.u32 256, 16
    %892 = vbcast.lane.b32.xlu0 %v882, %s891
    %v893 = vpop.permute.xlu0 %892
    %s895 = sor.u32 256, 24
    %896 = vbcast.lane.b32.xlu0 %v882, %s895
    %v897 = vpop.permute.xlu0 %896
    %s899 = sor.u32 256, 32
    %900 = vbcast.lane.b32.xlu0 %v882, %s899
    %v901 = vpop.permute.xlu0 %900
    %s903 = sor.u32 256, 40
    %904 = vbcast.lane.b32.xlu0 %v882, %s903
    %v905 = vpop.permute.xlu0 %904
    %s907 = sor.u32 256, 48
    %908 = vbcast.lane.b32.xlu0 %v882, %s907
    %v909 = vpop.permute.xlu0 %908
    %s911 = sor.u32 256, 56
    %912 = vbcast.lane.b32.xlu0 %v882, %s911
    %v913 = vpop.permute.xlu0 %912
    %v914 = vlaneseq
    %v915 = vshrl.u32 %v914, 7
    %v916 = vsub.s32 1, %v915
    %v917 = vrot.slane %v878, %v916
    %919 = vbcast.lane.b32.xlu0 %v917, 256
    %v920 = vpop.permute.xlu0 %919
    %s922 = sor.u32 256, 8
    %923 = vbcast.lane.b32.xlu0 %v917, %s922
    %v924 = vpop.permute.xlu0 %923
    %s926 = sor.u32 256, 16
    %927 = vbcast.lane.b32.xlu0 %v917, %s926
    %v928 = vpop.permute.xlu0 %927
    %s930 = sor.u32 256, 24
    %931 = vbcast.lane.b32.xlu0 %v917, %s930
    %v932 = vpop.permute.xlu0 %931
    %s934 = sor.u32 256, 32
    %935 = vbcast.lane.b32.xlu0 %v917, %s934
    %v936 = vpop.permute.xlu0 %935
    %s938 = sor.u32 256, 40
    %939 = vbcast.lane.b32.xlu0 %v917, %s938
    %v940 = vpop.permute.xlu0 %939
    %s942 = sor.u32 256, 48
    %943 = vbcast.lane.b32.xlu0 %v917, %s942
    %v944 = vpop.permute.xlu0 %943
    %s946 = sor.u32 256, 56
    %947 = vbcast.lane.b32.xlu0 %v917, %s946
    %v948 = vpop.permute.xlu0 %947
    %v949 = vlaneseq
    %v950 = vshrl.u32 %v949, 7
    %v951 = vsub.s32 2, %v950
    %v952 = vrot.slane %v878, %v951
    %954 = vbcast.lane.b32.xlu0 %v952, 256
    %v955 = vpop.permute.xlu0 %954
    %s957 = sor.u32 256, 8
    %958 = vbcast.lane.b32.xlu0 %v952, %s957
    %v959 = vpop.permute.xlu0 %958
    %s961 = sor.u32 256, 16
    %962 = vbcast.lane.b32.xlu0 %v952, %s961
    %v963 = vpop.permute.xlu0 %962
    %s965 = sor.u32 256, 24
    %966 = vbcast.lane.b32.xlu0 %v952, %s965
    %v967 = vpop.permute.xlu0 %966
    %s969 = sor.u32 256, 32
    %970 = vbcast.lane.b32.xlu0 %v952, %s969
    %v971 = vpop.permute.xlu0 %970
    %s973 = sor.u32 256, 40
    %974 = vbcast.lane.b32.xlu0 %v952, %s973
    %v975 = vpop.permute.xlu0 %974
    %s977 = sor.u32 256, 48
    %978 = vbcast.lane.b32.xlu0 %v952, %s977
    %v979 = vpop.permute.xlu0 %978
    %s981 = sor.u32 256, 56
    %982 = vbcast.lane.b32.xlu0 %v952, %s981
    %v983 = vpop.permute.xlu0 %982
    %v984 = vlaneseq
    %v985 = vshrl.u32 %v984, 7
    %v986 = vsub.s32 3, %v985
    %v987 = vrot.slane %v878, %v986
    %989 = vbcast.lane.b32.xlu0 %v987, 256
    %v990 = vpop.permute.xlu0 %989
    %s992 = sor.u32 256, 8
    %993 = vbcast.lane.b32.xlu0 %v987, %s992
    %v994 = vpop.permute.xlu0 %993
    %s996 = sor.u32 256, 16
    %997 = vbcast.lane.b32.xlu0 %v987, %s996
    %v998 = vpop.permute.xlu0 %997
    %s1000 = sor.u32 256, 24
    %1001 = vbcast.lane.b32.xlu0 %v987, %s1000
    %v1002 = vpop.permute.xlu0 %1001
    %s1004 = sor.u32 256, 32
    %1005 = vbcast.lane.b32.xlu0 %v987, %s1004
    %v1006 = vpop.permute.xlu0 %1005
    %s1008 = sor.u32 256, 40
    %1009 = vbcast.lane.b32.xlu0 %v987, %s1008
    %v1010 = vpop.permute.xlu0 %1009
    %s1012 = sor.u32 256, 48
    %1013 = vbcast.lane.b32.xlu0 %v987, %s1012
    %v1014 = vpop.permute.xlu0 %1013
    %s1016 = sor.u32 256, 56
    %1017 = vbcast.lane.b32.xlu0 %v987, %s1016
    %v1018 = vpop.permute.xlu0 %1017
    %v1019 = vlaneseq
    %v1020 = vshrl.u32 %v1019, 7
    %v1021 = vsub.s32 4, %v1020
    %v1022 = vrot.slane %v878, %v1021
    %1024 = vbcast.lane.b32.xlu0 %v1022, 256
    %v1025 = vpop.permute.xlu0 %1024
    %s1027 = sor.u32 256, 8
    %1028 = vbcast.lane.b32.xlu0 %v1022, %s1027
    %v1029 = vpop.permute.xlu0 %1028
    %s1031 = sor.u32 256, 16
    %1032 = vbcast.lane.b32.xlu0 %v1022, %s1031
    %v1033 = vpop.permute.xlu0 %1032
    %s1035 = sor.u32 256, 24
    %1036 = vbcast.lane.b32.xlu0 %v1022, %s1035
    %v1037 = vpop.permute.xlu0 %1036
    %s1039 = sor.u32 256, 32
    %1040 = vbcast.lane.b32.xlu0 %v1022, %s1039
    %v1041 = vpop.permute.xlu0 %1040
    %s1043 = sor.u32 256, 40
    %1044 = vbcast.lane.b32.xlu0 %v1022, %s1043
    %v1045 = vpop.permute.xlu0 %1044
    %s1047 = sor.u32 256, 48
    %1048 = vbcast.lane.b32.xlu0 %v1022, %s1047
    %v1049 = vpop.permute.xlu0 %1048
    %s1051 = sor.u32 256, 56
    %1052 = vbcast.lane.b32.xlu0 %v1022, %s1051
    %v1053 = vpop.permute.xlu0 %1052
    %v1054 = vlaneseq
    %v1055 = vshrl.u32 %v1054, 7
    %v1056 = vsub.s32 5, %v1055
    %v1057 = vrot.slane %v878, %v1056
    %1059 = vbcast.lane.b32.xlu0 %v1057, 256
    %v1060 = vpop.permute.xlu0 %1059
    %s1062 = sor.u32 256, 8
    %1063 = vbcast.lane.b32.xlu0 %v1057, %s1062
    %v1064 = vpop.permute.xlu0 %1063
    %s1066 = sor.u32 256, 16
    %1067 = vbcast.lane.b32.xlu0 %v1057, %s1066
    %v1068 = vpop.permute.xlu0 %1067
    %s1070 = sor.u32 256, 24
    %1071 = vbcast.lane.b32.xlu0 %v1057, %s1070
    %v1072 = vpop.permute.xlu0 %1071
    %s1074 = sor.u32 256, 32
    %1075 = vbcast.lane.b32.xlu0 %v1057, %s1074
    %v1076 = vpop.permute.xlu0 %1075
    %s1078 = sor.u32 256, 40
    %1079 = vbcast.lane.b32.xlu0 %v1057, %s1078
    %v1080 = vpop.permute.xlu0 %1079
    %s1082 = sor.u32 256, 48
    %1083 = vbcast.lane.b32.xlu0 %v1057, %s1082
    %v1084 = vpop.permute.xlu0 %1083
    %s1086 = sor.u32 256, 56
    %1087 = vbcast.lane.b32.xlu0 %v1057, %s1086
    %v1088 = vpop.permute.xlu0 %1087
    %v1089 = vlaneseq
    %v1090 = vshrl.u32 %v1089, 7
    %v1091 = vsub.s32 6, %v1090
    %v1092 = vrot.slane %v878, %v1091
    %1094 = vbcast.lane.b32.xlu0 %v1092, 256
    %v1095 = vpop.permute.xlu0 %1094
    %s1097 = sor.u32 256, 8
    %1098 = vbcast.lane.b32.xlu0 %v1092, %s1097
    %v1099 = vpop.permute.xlu0 %1098
    %s1101 = sor.u32 256, 16
    %1102 = vbcast.lane.b32.xlu0 %v1092, %s1101
    %v1103 = vpop.permute.xlu0 %1102
    %s1105 = sor.u32 256, 24
    %1106 = vbcast.lane.b32.xlu0 %v1092, %s1105
    %v1107 = vpop.permute.xlu0 %1106
    %s1109 = sor.u32 256, 32
    %1110 = vbcast.lane.b32.xlu0 %v1092, %s1109
    %v1111 = vpop.permute.xlu0 %1110
    %s1113 = sor.u32 256, 40
    %1114 = vbcast.lane.b32.xlu0 %v1092, %s1113
    %v1115 = vpop.permute.xlu0 %1114
    %s1117 = sor.u32 256, 48
    %1118 = vbcast.lane.b32.xlu0 %v1092, %s1117
    %v1119 = vpop.permute.xlu0 %1118
    %s1121 = sor.u32 256, 56
    %1122 = vbcast.lane.b32.xlu0 %v1092, %s1121
    %v1123 = vpop.permute.xlu0 %1122
    %v1124 = vlaneseq
    %v1125 = vshrl.u32 %v1124, 7
    %v1126 = vsub.s32 7, %v1125
    %v1127 = vrot.slane %v878, %v1126
    %1129 = vbcast.lane.b32.xlu0 %v1127, 256
    %v1130 = vpop.permute.xlu0 %1129
    %s1132 = sor.u32 256, 8
    %1133 = vbcast.lane.b32.xlu0 %v1127, %s1132
    %v1134 = vpop.permute.xlu0 %1133
    %s1136 = sor.u32 256, 16
    %1137 = vbcast.lane.b32.xlu0 %v1127, %s1136
    %v1138 = vpop.permute.xlu0 %1137
    %s1140 = sor.u32 256, 24
    %1141 = vbcast.lane.b32.xlu0 %v1127, %s1140
    %v1142 = vpop.permute.xlu0 %1141
    %s1144 = sor.u32 256, 32
    %1145 = vbcast.lane.b32.xlu0 %v1127, %s1144
    %v1146 = vpop.permute.xlu0 %1145
    %s1148 = sor.u32 256, 40
    %1149 = vbcast.lane.b32.xlu0 %v1127, %s1148
    %v1150 = vpop.permute.xlu0 %1149
    %s1152 = sor.u32 256, 48
    %1153 = vbcast.lane.b32.xlu0 %v1127, %s1152
    %v1154 = vpop.permute.xlu0 %1153
    %s1156 = sor.u32 256, 56
    %1157 = vbcast.lane.b32.xlu0 %v1127, %s1156
    %v1158 = vpop.permute.xlu0 %1157
    %v1159 = vmul.f32 %v35, %v885
    %v1160 = vmul.f32 %v36, %v889
    %v1161 = vmul.f32 %v37, %v893
    %v1162 = vmul.f32 %v38, %v897
    %v1163 = vmul.f32 %v39, %v901
    %v1164 = vmul.f32 %v40, %v905
    %v1165 = vmul.f32 %v41, %v909
    %v1166 = vmul.f32 %v42, %v913
    %v1167 = vmul.f32 %v43, %v920
    %v1168 = vmul.f32 %v44, %v924
    %v1169 = vmul.f32 %v45, %v928
    %v1170 = vmul.f32 %v46, %v932
    %v1171 = vmul.f32 %v47, %v936
    %v1172 = vmul.f32 %v48, %v940
    %v1173 = vmul.f32 %v49, %v944
    %v1174 = vmul.f32 %v50, %v948
    %v1175 = vmul.f32 %v51, %v955
    %v1176 = vmul.f32 %v52, %v959
    %v1177 = vmul.f32 %v53, %v963
    %v1178 = vmul.f32 %v54, %v967
    %v1179 = vmul.f32 %v55, %v971
    %v1180 = vmul.f32 %v56, %v975
    %v1181 = vmul.f32 %v57, %v979
    %v1182 = vmul.f32 %v58, %v983
    %v1183 = vmul.f32 %v59, %v990
    %v1184 = vmul.f32 %v60, %v994
    %v1185 = vmul.f32 %v61, %v998
    %v1186 = vmul.f32 %v62, %v1002
    %v1187 = vmul.f32 %v63, %v1006
    %v1188 = vmul.f32 %v64, %v1010
    %v1189 = vmul.f32 %v65, %v1014
    %v1190 = vmul.f32 %v66, %v1018
    %v1191 = vmul.f32 %v67, %v1025
    %v1192 = vmul.f32 %v68, %v1029
    %v1193 = vmul.f32 %v69, %v1033
    %v1194 = vmul.f32 %v70, %v1037
    %v1195 = vmul.f32 %v71, %v1041
    %v1196 = vmul.f32 %v72, %v1045
    %v1197 = vmul.f32 %v73, %v1049
    %v1198 = vmul.f32 %v74, %v1053
    %v1199 = vmul.f32 %v75, %v1060
    %v1200 = vmul.f32 %v76, %v1064
    %v1201 = vmul.f32 %v77, %v1068
    %v1202 = vmul.f32 %v78, %v1072
    %v1203 = vmul.f32 %v79, %v1076
    %v1204 = vmul.f32 %v80, %v1080
    %v1205 = vmul.f32 %v81, %v1084
    %v1206 = vmul.f32 %v82, %v1088
    %v1207 = vmul.f32 %v83, %v1095
    %v1208 = vmul.f32 %v84, %v1099
    %v1209 = vmul.f32 %v85, %v1103
    %v1210 = vmul.f32 %v86, %v1107
    %v1211 = vmul.f32 %v87, %v1111
    %v1212 = vmul.f32 %v88, %v1115
    %v1213 = vmul.f32 %v89, %v1119
    %v1214 = vmul.f32 %v90, %v1123
    %v1215 = vmul.f32 %v91, %v1130
    %v1216 = vmul.f32 %v92, %v1134
    %v1217 = vmul.f32 %v93, %v1138
    %v1218 = vmul.f32 %v94, %v1142
    %v1219 = vmul.f32 %v95, %v1146
    %v1220 = vmul.f32 %v96, %v1150
    %v1221 = vmul.f32 %v97, %v1154
    %v1222 = vmul.f32 %v98, %v1158
    %1223 = vst [vmem:[#allocation5] sm:$0xff] %v1159
    %1224 = vst [vmem:[#allocation5 + $0x8] sm:$0xff] %v1160
    %1225 = vst [vmem:[#allocation5 + $0x10] sm:$0xff] %v1161
    %1226 = vst [vmem:[#allocation5 + $0x18] sm:$0xff] %v1162
    %1227 = vst [vmem:[#allocation5 + $0x20] sm:$0xff] %v1163
    %1228 = vst [vmem:[#allocation5 + $0x28] sm:$0xff] %v1164
    %1229 = vst [vmem:[#allocation5 + $0x30] sm:$0xff] %v1165
    %1230 = vst [vmem:[#allocation5 + $0x38] sm:$0xff] %v1166
    %1231 = vst [vmem:[#allocation5 + $0x40] sm:$0xff] %v1167
    %1232 = vst [vmem:[#allocation5 + $0x48] sm:$0xff] %v1168
    %1233 = vst [vmem:[#allocation5 + $0x50] sm:$0xff] %v1169
    %1234 = vst [vmem:[#allocation5 + $0x58] sm:$0xff] %v1170
    %1235 = vst [vmem:[#allocation5 + $0x60] sm:$0xff] %v1171
    %1236 = vst [vmem:[#allocation5 + $0x68] sm:$0xff] %v1172
    %1237 = vst [vmem:[#allocation5 + $0x70] sm:$0xff] %v1173
    %1238 = vst [vmem:[#allocation5 + $0x78] sm:$0xff] %v1174
    %1239 = vst [vmem:[#allocation5 + $0x80] sm:$0xff] %v1175
    %1240 = vst [vmem:[#allocation5 + $0x88] sm:$0xff] %v1176
    %1241 = vst [vmem:[#allocation5 + $0x90] sm:$0xff] %v1177
    %1242 = vst [vmem:[#allocation5 + $0x98] sm:$0xff] %v1178
    %1243 = vst [vmem:[#allocation5 + $0xa0] sm:$0xff] %v1179
    %1244 = vst [vmem:[#allocation5 + $0xa8] sm:$0xff] %v1180
    %1245 = vst [vmem:[#allocation5 + $0xb0] sm:$0xff] %v1181
    %1246 = vst [vmem:[#allocation5 + $0xb8] sm:$0xff] %v1182
    %1247 = vst [vmem:[#allocation5 + $0xc0] sm:$0xff] %v1183
    %1248 = vst [vmem:[#allocation5 + $0xc8] sm:$0xff] %v1184
    %1249 = vst [vmem:[#allocation5 + $0xd0] sm:$0xff] %v1185
    %1250 = vst [vmem:[#allocation5 + $0xd8] sm:$0xff] %v1186
    %1251 = vst [vmem:[#allocation5 + $0xe0] sm:$0xff] %v1187
    %1252 = vst [vmem:[#allocation5 + $0xe8] sm:$0xff] %v1188
    %1253 = vst [vmem:[#allocation5 + $0xf0] sm:$0xff] %v1189
    %1254 = vst [vmem:[#allocation5 + $0xf8] sm:$0xff] %v1190
    %1255 = vst [vmem:[#allocation5 + $0x100] sm:$0xff] %v1191
    %1256 = vst [vmem:[#allocation5 + $0x108] sm:$0xff] %v1192
    %1257 = vst [vmem:[#allocation5 + $0x110] sm:$0xff] %v1193
    %1258 = vst [vmem:[#allocation5 + $0x118] sm:$0xff] %v1194
    %1259 = vst [vmem:[#allocation5 + $0x120] sm:$0xff] %v1195
    %1260 = vst [vmem:[#allocation5 + $0x128] sm:$0xff] %v1196
    %1261 = vst [vmem:[#allocation5 + $0x130] sm:$0xff] %v1197
    %1262 = vst [vmem:[#allocation5 + $0x138] sm:$0xff] %v1198
    %1263 = vst [vmem:[#allocation5 + $0x140] sm:$0xff] %v1199
    %1264 = vst [vmem:[#allocation5 + $0x148] sm:$0xff] %v1200
    %1265 = vst [vmem:[#allocation5 + $0x150] sm:$0xff] %v1201
    %1266 = vst [vmem:[#allocation5 + $0x158] sm:$0xff] %v1202
    %1267 = vst [vmem:[#allocation5 + $0x160] sm:$0xff] %v1203
    %1268 = vst [vmem:[#allocation5 + $0x168] sm:$0xff] %v1204
    %1269 = vst [vmem:[#allocation5 + $0x170] sm:$0xff] %v1205
    %1270 = vst [vmem:[#allocation5 + $0x178] sm:$0xff] %v1206
    %1271 = vst [vmem:[#allocation5 + $0x180] sm:$0xff] %v1207
    %1272 = vst [vmem:[#allocation5 + $0x188] sm:$0xff] %v1208
    %1273 = vst [vmem:[#allocation5 + $0x190] sm:$0xff] %v1209
    %1274 = vst [vmem:[#allocation5 + $0x198] sm:$0xff] %v1210
    %1275 = vst [vmem:[#allocation5 + $0x1a0] sm:$0xff] %v1211
    %1276 = vst [vmem:[#allocation5 + $0x1a8] sm:$0xff] %v1212
    %1277 = vst [vmem:[#allocation5 + $0x1b0] sm:$0xff] %v1213
    %1278 = vst [vmem:[#allocation5 + $0x1b8] sm:$0xff] %v1214
    %1279 = vst [vmem:[#allocation5 + $0x1c0] sm:$0xff] %v1215
    %1280 = vst [vmem:[#allocation5 + $0x1c8] sm:$0xff] %v1216
    %1281 = vst [vmem:[#allocation5 + $0x1d0] sm:$0xff] %v1217
    %1282 = vst [vmem:[#allocation5 + $0x1d8] sm:$0xff] %v1218
    %1283 = vst [vmem:[#allocation5 + $0x1e0] sm:$0xff] %v1219
    %1284 = vst [vmem:[#allocation5 + $0x1e8] sm:$0xff] %v1220
    %1285 = vst [vmem:[#allocation5 + $0x1f0] sm:$0xff] %v1221
    %1286 = vst [vmem:[#allocation5 + $0x1f8] sm:$0xff] %v1222
    // Predicated region
    $region26: #{tpu_custom_call.1} parent=1 // pred_check
      _
    $region27: #{tpu_custom_call.1} parent=1 // pred_check_branch
      %1288 = sbr.rel (0) target = $region29
    $region28: #{tpu_custom_call.1} parent=1 // pred_region
      %s1290 = ssub.s32 8192, 8192
      %1291 = vsyncadd [#allocation4], %s1290
      %s1292 = sshll.u32 [#allocation5], 4
      %s1293 = int_to_ptr.vmem [resolvable:$true] %s1292
      %1298 = dma.vmem_to_hbm [thread:$0]  %s1293, 8192, %s5, [#allocation4], 128, 128, 8
    $region29: #{tpu_custom_call.1} parent=1 // pred_fallthru
      _
    // Predicated region
    $region30: #{tpu_custom_call.1} parent=1 // pred_check
      _
    $region31: #{tpu_custom_call.1} parent=1 // pred_check_branch
      %1300 = sbr.rel (0) target = $region33
    $region32: #{tpu_custom_call.1} parent=1 // pred_region
      %1301 = dma.done [#allocation4], 8192
    $region33: #{tpu_custom_call.1} parent=1 // pred_fallthru
      _
    %1302 = vsyncpa [#allocation3], 1
    %1303 = vsyncpa [#allocation4], 1

</llo_original>
